<compile_context>
chip_gen: v5e
topology: v5e:2x2
jax: 0.10.0
libtpu: 0.0.40
codegen_flags: <defaults>
</compile_context>

<pallas_src>
import numpy as np
import jax
import jax.numpy as jnp
from jax.experimental import pallas as pl
from jax.experimental.pallas import tpu as pltpu

# ---- Detect hyper-params (standard YOLOv5, small channels for the demo) ----
NC = 80
NO = NC + 5                                  # 85
ANCHORS = ((10, 13, 16, 30, 33, 23),
           (30, 61, 62, 45, 59, 119),
           (116, 90, 156, 198, 373, 326))
NL = len(ANCHORS)                            # 3 levels
NA = len(ANCHORS[0]) // 2                    # 3 anchors / level
STRIDES = (8.0, 16.0, 32.0)
CH = (16, 32, 64)                            # small input channels per level
IMG = 64                                     # small image -> ny,nx = 8,4,2

CO = NA * NO                                 # 255 output channels of the 1x1 conv
CO_PAD = 256                                 # lane-dense output width
COEF_ROWS = 8                                # sublane-aligned coef block


# ----------------------------- Pallas kernel --------------------------------
def _detect_kernel(x_ref, w_ref, coef_ref, mask_ref, gx_ref, gy_ref,
                   dec_ref, raw_ref):
    # x_ref:    (1, R_PAD, CIN_PAD)   activations (channels-last, zero-padded)
    # w_ref:    (1, CIN_PAD, CO_PAD)  1x1 conv weight (zero-padded)
    # coef_ref: (1, 8, CO_PAD)        row 0 = bias, row 1 = A (quad), row 2 = B (lin)
    # mask_ref: (8, CO_PAD)           row 0 = x-lane mask, row 1 = y-lane mask
    # gx_ref, gy_ref: (1, R_PAD, 1)   (grid - 0.5) * stride per row
    # dec_ref, raw_ref: (1, R_PAD, CO_PAD)
    coef = coef_ref[0]                                   # (8, CO_PAD)
    logits = jnp.dot(x_ref[0], w_ref[0],
                     preferred_element_type=jnp.float32) + coef[0:1]
    raw_ref[0] = logits                                  # pre-sigmoid conv output
    s = jax.nn.sigmoid(logits)                           # EUP
    # decode = A*s^2 + B*s + C
    #   xy lanes:   A = 0,               B = 2*stride, C = (grid - 0.5)*stride
    #   wh lanes:   A = 4*anchor*stride, B = 0,        C = 0
    #   conf lanes: A = 0,               B = 1,        C = 0
    C = mask_ref[0:1] * gx_ref[0] + mask_ref[1:2] * gy_ref[0]   # (R_PAD, CO_PAD)
    dec_ref[0] = coef[1:2] * (s * s) + coef[2:3] * s + C


# ------------------------------- wrapper -------------------------------------
def detect_forward(xs, weights, biases, anchors, strides):
    """Inference forward of Detect (bs == 1). Returns (cat(z, 1), [x_i ...])."""
    shapes = [tuple(x.shape) for x in xs]                 # (1, Cin, ny, nx)
    for s in shapes:
        assert s[0] == 1, "Detect decode path assumes batch size 1"
    r_pad = max(s[2] * s[3] for s in shapes)
    r_pad = ((r_pad + 7) // 8) * 8                        # sublane-aligned rows
    cin_pad = max(s[1] for s in shapes)
    cin_pad = ((cin_pad + 7) // 8) * 8

    anchors_np = np.asarray(anchors, np.float32).reshape(NL, NA, 2)

    # ---- small precomputed constants (host-side, numpy) ----
    coef_all = np.zeros((NL, COEF_ROWS, CO_PAD), np.float32)  # bias / A / B
    gx_all = np.zeros((NL, r_pad, 1), np.float32)
    gy_all = np.zeros((NL, r_pad, 1), np.float32)
    mask_all = np.zeros((COEF_ROWS, CO_PAD), np.float32)      # x / y lane masks
    for a in range(NA):
        mask_all[0, a * NO + 0] = 1.0
        mask_all[1, a * NO + 1] = 1.0
    for i in range(NL):
        _, cin, ny, nx = shapes[i]
        nyx = ny * nx
        st = float(strides[i])
        for a in range(NA):
            coef_all[i, 1, a * NO + 2] = 4.0 * anchors_np[i, a, 0] * st   # A (w)
            coef_all[i, 1, a * NO + 3] = 4.0 * anchors_np[i, a, 1] * st   # A (h)
            coef_all[i, 2, a * NO + 0] = 2.0 * st                         # B (x)
            coef_all[i, 2, a * NO + 1] = 2.0 * st                         # B (y)
            coef_all[i, 2, a * NO + 4: a * NO + NO] = 1.0                 # B (conf)
        r = np.arange(nyx)
        gx_all[i, :nyx, 0] = (r % nx - 0.5) * st          # xv - 0.5, scaled
        gy_all[i, :nyx, 0] = (r // nx - 0.5) * st         # yv - 0.5, scaled

    # ---- pad & stack per-level tensors (device-side) ----
    x_list, w_list = [], []
    for i in range(NL):
        _, cin, ny, nx = shapes[i]
        nyx = ny * nx
        xh = jnp.transpose(xs[i][0], (1, 2, 0)).reshape(nyx, cin)     # NCHW -> (nyx, Cin)
        x_list.append(jnp.pad(xh, ((0, r_pad - nyx), (0, cin_pad - cin))))
        w_list.append(jnp.pad(weights[i], ((0, cin_pad - cin), (0, CO_PAD - CO))))
        coef_all[i, 0, :CO] = np.zeros((CO,), np.float32)  # placeholder, filled below
    x_all = jnp.stack(x_list)                             # (NL, r_pad, cin_pad)
    w_all = jnp.stack(w_list)                             # (NL, cin_pad, CO_PAD)

    coef_dev = jnp.asarray(coef_all)
    # insert the (device) biases into row 0 of the coef block
    bias_rows = jnp.stack([jnp.pad(biases[i].reshape(1, CO),
                                   ((0, 0), (0, CO_PAD - CO))) for i in range(NL)])
    coef_dev = coef_dev.at[:, 0:1, :].set(bias_rows)

    dec_all, raw_all = pl.pallas_call(
        _detect_kernel,
        out_shape=(jax.ShapeDtypeStruct((NL, r_pad, CO_PAD), jnp.float32),
                   jax.ShapeDtypeStruct((NL, r_pad, CO_PAD), jnp.float32)),
        grid=(NL,),
        in_specs=[
            pl.BlockSpec((1, r_pad, cin_pad), lambda l: (l, 0, 0)),   # activations
            pl.BlockSpec((1, cin_pad, CO_PAD), lambda l: (l, 0, 0)),  # 1x1 conv weight
            pl.BlockSpec((1, COEF_ROWS, CO_PAD), lambda l: (l, 0, 0)),  # bias/A/B
            pl.BlockSpec((COEF_ROWS, CO_PAD), lambda l: (0, 0)),      # x/y lane masks
            pl.BlockSpec((1, r_pad, 1), lambda l: (l, 0, 0)),         # grid-x * stride
            pl.BlockSpec((1, r_pad, 1), lambda l: (l, 0, 0)),         # grid-y * stride
        ],
        out_specs=(pl.BlockSpec((1, r_pad, CO_PAD), lambda l: (l, 0, 0)),
                   pl.BlockSpec((1, r_pad, CO_PAD), lambda l: (l, 0, 0))),
        compiler_params=pltpu.CompilerParams(dimension_semantics=("parallel",)),
    )(x_all, w_all, coef_dev, jnp.asarray(mask_all),
      jnp.asarray(gx_all), jnp.asarray(gy_all))

    # ---- un-pad and reshape to torch layout ----
    z, x_out = [], []
    for i in range(NL):
        _, _, ny, nx = shapes[i]
        nyx = ny * nx
        dec = dec_all[i, :nyx, :CO].reshape(ny, nx, NA, NO).transpose(2, 0, 1, 3)
        raw = raw_all[i, :nyx, :CO].reshape(ny, nx, NA, NO).transpose(2, 0, 1, 3)
        z.append(dec.reshape(1, NA * ny * nx, NO))
        x_out.append(raw)                                 # (na, ny, nx, no)
    return jnp.concatenate(z, axis=1), x_out


# ------------------------------ pure-JAX reference --------------------------
def detect_reference(xs, weights, biases, anchors, strides):
    z, x_out = [], []
    for i in range(NL):
        x = xs[i]                                              # (1, Cin, ny, nx)
        bs, cin, ny, nx = x.shape
        conv = jnp.einsum("bchw,co->bohw", x, weights[i]) + biases[i].reshape(1, -1, 1, 1)
        xi = conv.reshape(bs * NA, NO, ny, nx).transpose(0, 2, 3, 1)   # (na, ny, nx, no)
        yv, xv = jnp.meshgrid(jnp.arange(ny, dtype=jnp.float32),
                              jnp.arange(nx, dtype=jnp.float32), indexing="ij")
        grid = jnp.broadcast_to(jnp.stack((xv, yv), 2)[None], (NA, ny, nx, 2)) - 0.5
        ag = (jnp.asarray(anchors[i], jnp.float32) * strides[i]).reshape(NA, 1, 1, 2)
        ag = jnp.broadcast_to(ag, (NA, ny, nx, 2))
        s = jax.nn.sigmoid(xi)
        xy = (s[..., :2] * 2 + grid) * strides[i]
        wh = (s[..., 2:4] * 2) ** 2 * ag
        y = jnp.concatenate((xy, wh, s[..., 4:]), axis=-1)
        z.append(y.reshape(1, NA * ny * nx, NO))
        x_out.append(xi)
    return jnp.concatenate(z, axis=1), x_out


# ----------------------------------- main ------------------------------------
if __name__ == "__main__":
    key = jax.random.PRNGKey(0)
    anchors = jnp.asarray(ANCHORS, jnp.float32).reshape(NL, NA, 2)

    xs, weights, biases = [], [], []
    for i in range(NL):
        ny = nx = IMG // int(STRIDES[i])
        key, k1, k2, k3 = jax.random.split(key, 4)
        xs.append(jax.random.normal(k1, (1, CH[i], ny, nx), jnp.float32))
        weights.append(jax.random.normal(k2, (CH[i], CO), jnp.float32) * 0.05)
        biases.append(jax.random.normal(k3, (1, CO), jnp.float32) * 0.1)

    z, x_out = detect_forward(xs, weights, biases, anchors, STRIDES)
    jax.block_until_ready(z)
    for xi in x_out:
        jax.block_until_ready(xi)

    # correctness check vs pure-JAX reference
    z_ref, x_ref = detect_reference(xs, weights, biases, anchors, STRIDES)
    total = sum((IMG // int(s)) ** 2 for s in STRIDES) * NA
    assert z.shape == (1, total, NO), z.shape
    np.testing.assert_allclose(np.asarray(z), np.asarray(z_ref), rtol=5e-2, atol=5e-2)
    for a, b in zip(x_out, x_ref):
        np.testing.assert_allclose(np.asarray(a), np.asarray(b), rtol=5e-2, atol=5e-2)

    print("KERNEL_OK")
</pallas_src>

<mosaic_0001>
module attributes {stable_mosaic.version = 11 : i64} {
  func.func @_detect_kernel(%arg0: i32, %arg1: memref<1x64x64xf32, #tpu.memory_space<vmem>>, %arg2: memref<1x64x256xf32, #tpu.memory_space<vmem>>, %arg3: memref<1x8x256xf32, #tpu.memory_space<vmem>>, %arg4: memref<8x256xf32, #tpu.memory_space<vmem>>, %arg5: memref<1x64x1xf32, #tpu.memory_space<vmem>>, %arg6: memref<1x64x1xf32, #tpu.memory_space<vmem>>, %arg7: memref<1x64x256xf32, #tpu.memory_space<vmem>>, %arg8: memref<1x64x256xf32, #tpu.memory_space<vmem>>) attributes {dimension_semantics = [#tpu.dimension_semantics<parallel>], iteration_bounds = array<i64: 3>, scalar_prefetch = 0 : i64, scratch_operands = 0 : i64, tpu.core_type = #tpu.core_type<tc>, window_params = [{transform_indices = @transform_0, window_bounds = array<i64: 1, 64, 64>}, {transform_indices = @transform_1, window_bounds = array<i64: 1, 64, 256>}, {transform_indices = @transform_2, window_bounds = array<i64: 1, 8, 256>}, {pipeline_mode = #tpu.pipeline_mode<synchronous>, transform_indices = @transform_3, window_bounds = array<i64: 8, 256>}, {transform_indices = @transform_4, window_bounds = array<i64: 1, 64, 1>}, {transform_indices = @transform_5, window_bounds = array<i64: 1, 64, 1>}, {transform_indices = @transform_6, window_bounds = array<i64: 1, 64, 256>}, {transform_indices = @transform_7, window_bounds = array<i64: 1, 64, 256>}]} {
    %c0 = arith.constant 0 : index
    %c0_0 = arith.constant 0 : index
    %c0_1 = arith.constant 0 : index
    %0 = vector.load %arg3[%c0, %c0_0, %c0_1] : memref<1x8x256xf32, #tpu.memory_space<vmem>>, vector<1x8x256xf32>
    %1 = vector.shape_cast %0 : vector<1x8x256xf32> to vector<8x256xf32>
    %c0_2 = arith.constant 0 : index
    %c0_3 = arith.constant 0 : index
    %c0_4 = arith.constant 0 : index
    %2 = vector.load %arg1[%c0_2, %c0_3, %c0_4] : memref<1x64x64xf32, #tpu.memory_space<vmem>>, vector<1x64x64xf32>
    %3 = vector.shape_cast %2 : vector<1x64x64xf32> to vector<64x64xf32>
    %c0_5 = arith.constant 0 : index
    %c0_6 = arith.constant 0 : index
    %c0_7 = arith.constant 0 : index
    %4 = vector.load %arg2[%c0_5, %c0_6, %c0_7] : memref<1x64x256xf32, #tpu.memory_space<vmem>>, vector<1x64x256xf32>
    %5 = vector.shape_cast %4 : vector<1x64x256xf32> to vector<64x256xf32>
    %cst = arith.constant dense<0.000000e+00> : vector<64x256xf32>
    %6 = tpu.matmul %3, %5, %cst {dimension_numbers = #tpu.dot_dimension_numbers<[1], [0], [0], [1], [0, 0, 1, 1], [], []>} : vector<64x64xf32>, vector<64x256xf32>, vector<64x256xf32> -> vector<64x256xf32>
    %7 = vector.extract_strided_slice %1 {offsets = [0, 0], sizes = [1, 256], strides = [1, 1]} : vector<8x256xf32> to vector<1x256xf32>
    %8 = vector.broadcast %7 : vector<1x256xf32> to vector<64x256xf32>
    %9 = arith.addf %6, %8 : vector<64x256xf32>
    %c0_8 = arith.constant 0 : index
    %c0_9 = arith.constant 0 : index
    %c0_10 = arith.constant 0 : index
    %10 = vector.load %arg8[%c0_8, %c0_9, %c0_10] : memref<1x64x256xf32, #tpu.memory_space<vmem>>, vector<1x64x256xf32>
    %11 = vector.shape_cast %10 : vector<1x64x256xf32> to vector<64x256xf32>
    %12 = vector.shape_cast %9 : vector<64x256xf32> to vector<1x64x256xf32>
    tpu.vector_store %arg8[%c0_8, %c0_9, %c0_10], %12 {strides = array<i32>} : memref<1x64x256xf32, #tpu.memory_space<vmem>>, vector<1x64x256xf32>,
    %13 = arith.negf %9 : vector<64x256xf32>
    %14 = math.exp %13 : vector<64x256xf32>
    %cst_11 = arith.constant 1.000000e+00 : f32
    %15 = vector.broadcast %cst_11 : f32 to vector<64x256xf32>
    %16 = arith.addf %15, %14 : vector<64x256xf32>
    %17 = arith.divf %15, %16 : vector<64x256xf32>
    %c0_12 = arith.constant 0 : index
    %c0_13 = arith.constant 0 : index
    %18 = vector.load %arg4[%c0_12, %c0_13] : memref<8x256xf32, #tpu.memory_space<vmem>>, vector<1x256xf32>
    %c0_14 = arith.constant 0 : index
    %c0_15 = arith.constant 0 : index
    %c0_16 = arith.constant 0 : index
    %19 = vector.load %arg5[%c0_14, %c0_15, %c0_16] : memref<1x64x1xf32, #tpu.memory_space<vmem>>, vector<1x64x1xf32>
    %20 = vector.shape_cast %19 : vector<1x64x1xf32> to vector<64x1xf32>
    %21 = vector.broadcast %18 : vector<1x256xf32> to vector<64x256xf32>
    %22 = vector.broadcast %20 : vector<64x1xf32> to vector<64x256xf32>
    %23 = arith.mulf %21, %22 : vector<64x256xf32>
    %c1 = arith.constant 1 : index
    %c0_17 = arith.constant 0 : index
    %24 = vector.load %arg4[%c1, %c0_17] : memref<8x256xf32, #tpu.memory_space<vmem>>, vector<1x256xf32>
    %c0_18 = arith.constant 0 : index
    %c0_19 = arith.constant 0 : index
    %c0_20 = arith.constant 0 : index
    %25 = vector.load %arg6[%c0_18, %c0_19, %c0_20] : memref<1x64x1xf32, #tpu.memory_space<vmem>>, vector<1x64x1xf32>
    %26 = vector.shape_cast %25 : vector<1x64x1xf32> to vector<64x1xf32>
    %27 = vector.broadcast %24 : vector<1x256xf32> to vector<64x256xf32>
    %28 = vector.broadcast %26 : vector<64x1xf32> to vector<64x256xf32>
    %29 = arith.mulf %27, %28 : vector<64x256xf32>
    %30 = arith.addf %23, %29 : vector<64x256xf32>
    %31 = vector.extract_strided_slice %1 {offsets = [1, 0], sizes = [1, 256], strides = [1, 1]} : vector<8x256xf32> to vector<1x256xf32>
    %32 = arith.mulf %17, %17 : vector<64x256xf32>
    %33 = vector.broadcast %31 : vector<1x256xf32> to vector<64x256xf32>
    %34 = arith.mulf %33, %32 : vector<64x256xf32>
    %35 = vector.extract_strided_slice %1 {offsets = [2, 0], sizes = [1, 256], strides = [1, 1]} : vector<8x256xf32> to vector<1x256xf32>
    %36 = vector.broadcast %35 : vector<1x256xf32> to vector<64x256xf32>
    %37 = arith.mulf %36, %17 : vector<64x256xf32>
    %38 = arith.addf %34, %37 : vector<64x256xf32>
    %39 = arith.addf %38, %30 : vector<64x256xf32>
    %c0_21 = arith.constant 0 : index
    %c0_22 = arith.constant 0 : index
    %c0_23 = arith.constant 0 : index
    %40 = vector.load %arg7[%c0_21, %c0_22, %c0_23] : memref<1x64x256xf32, #tpu.memory_space<vmem>>, vector<1x64x256xf32>
    %41 = vector.shape_cast %40 : vector<1x64x256xf32> to vector<64x256xf32>
    %42 = vector.shape_cast %39 : vector<64x256xf32> to vector<1x64x256xf32>
    tpu.vector_store %arg7[%c0_21, %c0_22, %c0_23], %42 {strides = array<i32>} : memref<1x64x256xf32, #tpu.memory_space<vmem>>, vector<1x64x256xf32>,
    return
  }
  func.func @transform_0(%arg0: i32) -> (i32, i32, i32) {
    %c0_i32 = arith.constant 0 : i32
    %c0_i32_0 = arith.constant 0 : i32
    %c0_i32_1 = arith.constant 0 : i32
    return %arg0, %c0_i32, %c0_i32_0 : i32, i32, i32
  }
  func.func @transform_1(%arg0: i32) -> (i32, i32, i32) {
    %c0_i32 = arith.constant 0 : i32
    %c0_i32_0 = arith.constant 0 : i32
    %c0_i32_1 = arith.constant 0 : i32
    return %arg0, %c0_i32, %c0_i32_0 : i32, i32, i32
  }
  func.func @transform_2(%arg0: i32) -> (i32, i32, i32) {
    %c0_i32 = arith.constant 0 : i32
    %c0_i32_0 = arith.constant 0 : i32
    %c0_i32_1 = arith.constant 0 : i32
    return %arg0, %c0_i32, %c0_i32_0 : i32, i32, i32
  }
  func.func @transform_3(%arg0: i32) -> (i32, i32) {
    %c0_i32 = arith.constant 0 : i32
    %c0_i32_0 = arith.constant 0 : i32
    %c0_i32_1 = arith.constant 0 : i32
    return %c0_i32, %c0_i32_0 : i32, i32
  }
  func.func @transform_4(%arg0: i32) -> (i32, i32, i32) {
    %c0_i32 = arith.constant 0 : i32
    %c0_i32_0 = arith.constant 0 : i32
    %c0_i32_1 = arith.constant 0 : i32
    return %arg0, %c0_i32, %c0_i32_0 : i32, i32, i32
  }
  func.func @transform_5(%arg0: i32) -> (i32, i32, i32) {
    %c0_i32 = arith.constant 0 : i32
    %c0_i32_0 = arith.constant 0 : i32
    %c0_i32_1 = arith.constant 0 : i32
    return %arg0, %c0_i32, %c0_i32_0 : i32, i32, i32
  }
  func.func @transform_6(%arg0: i32) -> (i32, i32, i32) {
    %c0_i32 = arith.constant 0 : i32
    %c0_i32_0 = arith.constant 0 : i32
    %c0_i32_1 = arith.constant 0 : i32
    return %arg0, %c0_i32, %c0_i32_0 : i32, i32, i32
  }
  func.func @transform_7(%arg0: i32) -> (i32, i32, i32) {
    %c0_i32 = arith.constant 0 : i32
    %c0_i32_0 = arith.constant 0 : i32
    %c0_i32_1 = arith.constant 0 : i32
    return %arg0, %c0_i32, %c0_i32_0 : i32, i32, i32
  }
}

</mosaic_0001>

<llo_original>
// kernel: tpu_custom_call.1
$region0: #{tpu_custom_call.1}
  #allocation0 [shape = 'u32[]', space=smem, size = 0x4, offset = 0x4, fixed_abs, tag = 'smem constant byte address 0x4 - core index']
  #allocation1 [shape = 'u32[72,128]{1,0:T(1,128)}', space=vmem, size = 0x9000, scoped, tag = 'internal scratch']
  %s0 = inlined_call_operand.hbm [shape: f32[3,64,64], index: 0, kind: input, shape index: {}]
  %s1 = inlined_call_operand.vmem [shape: f32[3,64,256], index: 1, kind: input, shape index: {}]
  %s2 = inlined_call_operand.hbm [shape: f32[3,8,256], index: 2, kind: input, shape index: {}]
  %s3 = inlined_call_operand.hbm [shape: f32[8,256], index: 3, kind: input, shape index: {}]
  %s4 = inlined_call_operand.vmem [shape: f32[3,64,1], index: 4, kind: input, shape index: {}]
  %s5 = inlined_call_operand.vmem [shape: f32[3,64,1], index: 5, kind: input, shape index: {}]
  %s6 = inlined_call_operand.hbm [shape: f32[3,64,256], index: 6, kind: output, shape index: {0}]
  %s7 = inlined_call_operand.hbm [shape: f32[3,64,256], index: 7, kind: output, shape index: {1}]
  %8 = xla_tuple %s6, %s7
  %s9 = sld [smem:[#allocation0]]
  $region77: #{tpu_custom_call.1} parent=0
    _
  %s11 = ssub.s32 1, %s9
  %s12 = scalar_select 0, %s11, %s9
  $region1: #{tpu_custom_call.1} parent=0
    #allocation2 [shape = 'u8[65536]{0}', space=vmem, size = 0x10000, scoped, tag = 'input window, operand 0']
    #allocation3 [shape = 's32[2]{0}', space=sflag, size = 0x8, scoped, tag = 'scoped memory for tpu_custom_call.1']
    #allocation4 [shape = 's32[2]{0}', space=sflag, size = 0x8, scoped, tag = 'scoped memory for tpu_custom_call.1']
    #allocation5 [shape = 'u8[16384]{0}', space=vmem, size = 0x4000, scoped, tag = 'input window, operand 2']
    #allocation6 [shape = 's32[2]{0}', space=sflag, size = 0x8, scoped, tag = 'scoped memory for tpu_custom_call.1']
    #allocation7 [shape = 'u8[8192]{0}', space=vmem, size = 0x2000, scoped, tag = 'input window, operand 3, single buffered']
    #allocation8 [shape = 'u8[131072]{0}', space=vmem, size = 0x20000, scoped, tag = 'output window, operand 0']
    #allocation9 [shape = 'u8[131072]{0}', space=vmem, size = 0x20000, scoped, tag = 'output window, operand 1']
    #allocation10 [shape = 's32[2]{0}', space=sflag, size = 0x8, scoped, tag = 'scoped memory for tpu_custom_call.1']
    %13 = vsyncpa [#allocation3], 0
    %s14 = scalar_lea.sflag [#allocation3], 1
    %15 = vsyncpa %s14, 0
    %16 = vsyncpa [#allocation6], 0
    %s17 = scalar_lea.sflag [#allocation6], 1
    %18 = vsyncpa %s17, 0
    %19 = vsyncpa [#allocation4], 0
    %s20 = scalar_lea.sflag [#allocation4], 1
    %21 = vsyncpa %s20, 0
    %22 = vsyncpa [#allocation10], 0
    %s23 = scalar_lea.sflag [#allocation10], 1
    %24 = vsyncpa %s23, 0
    loop: start=0, step=1, limit=5
    $region2: #{tpu_custom_call.1} parent=1 // loop_pre_header
      _
    $region3: #{tpu_custom_call.1} parent=1 // loop_header
      %s26 = sphi 0, %s30
      %p27 = scmp.ge.s32.totalorder %s26, 5
      %s36 = sphi 0, %s38
      %s39 = sphi 0, %s36
      %s40 = sphi 0, %s39
      %s56 = sphi 0, %s40
      %s62 = sphi 0, %s64
      %s65 = sphi 0, %s62
      %s66 = sphi 0, %s65
      %s82 = sphi 0, %s66
      %s88 = sphi 0, %s90
      %s91 = sphi 0, %s88
      %s92 = sphi 0, %s91
      %s108 = sphi 0, %s92
      %s112 = sphi 0, %s112
      %s114 = sphi 0, %s112
      %s115 = sphi 0, %s114
      %s129 = sphi 0, %s115
      %s135 = sphi 0, %s137
      %s138 = sphi 0, %s135
      %s139 = sphi 0, %s138
      %s155 = sphi 0, %s139
      %s161 = sphi 0, %s163
      %s164 = sphi 0, %s161
      %s165 = sphi 0, %s164
      %s181 = sphi 0, %s165
      %s187 = sphi 0, %s189
      %s190 = sphi 0, %s187
      %s191 = sphi 0, %s190
      %s207 = sphi 0, %s191
      %s213 = sphi 0, %s215
      %s216 = sphi 0, %s213
      %s217 = sphi 0, %s216
      %s233 = sphi 0, %s217
    $region4: #{tpu_custom_call.1} parent=1 // loop_header_branch
      %29 = sbr.rel (%p27) target = $region8
    $region5: #{tpu_custom_call.1} parent=1 // loop_body
      %s31 = ssub.s32 %s26, 1
      %s32 = ssub.s32 %s26, 2
      %s33 = sadd.s32 %s26, 1
      %s34 = ssub.s32 %s26, %s33
      %p35 = scmp.eq.s32.totalorder %s34, 0
      %s37 = sadd.s32 %s36, 1
      %s38 = scalar_select %p35, %s36, %s37
      %p41 = pneg %p35
      %p42 = scmp.eq.s32.totalorder %s26, 2
      %p43 = por %p41, %p42
      %p44 = scmp.ne.s32.totalorder %s36, %s39
      %p45 = scmp.eq.s32.totalorder %s26, 0
      %p46 = por %p44, %p45
      %p47 = scmp.ne.s32.totalorder %s36, %s39
      %p48 = scmp.eq.s32.totalorder %s31, 2
      %p49 = por %p47, %p48
      %p50 = scmp.ne.s32.totalorder %s39, %s40
      %p51 = scmp.eq.s32.totalorder %s31, 0
      %p52 = por %p50, %p51
      %p53 = scmp.ne.s32.totalorder %s39, %s40
      %p54 = scmp.eq.s32.totalorder %s32, 2
      %p55 = por %p53, %p54
      %p57 = scmp.ne.s32.totalorder %s40, %s56
      %p58 = scmp.eq.s32.totalorder %s32, 0
      %p59 = por %p57, %p58
      %s60 = ssub.s32 %s26, %s33
      %p61 = scmp.eq.s32.totalorder %s60, 0
      %s63 = sadd.s32 %s62, 1
      %s64 = scalar_select %p61, %s62, %s63
      %p67 = pneg %p61
      %p68 = scmp.eq.s32.totalorder %s26, 2
      %p69 = por %p67, %p68
      %p70 = scmp.ne.s32.totalorder %s62, %s65
      %p71 = scmp.eq.s32.totalorder %s26, 0
      %p72 = por %p70, %p71
      %p73 = scmp.ne.s32.totalorder %s62, %s65
      %p74 = scmp.eq.s32.totalorder %s31, 2
      %p75 = por %p73, %p74
      %p76 = scmp.ne.s32.totalorder %s65, %s66
      %p77 = scmp.eq.s32.totalorder %s31, 0
      %p78 = por %p76, %p77
      %p79 = scmp.ne.s32.totalorder %s65, %s66
      %p80 = scmp.eq.s32.totalorder %s32, 2
      %p81 = por %p79, %p80
      %p83 = scmp.ne.s32.totalorder %s66, %s82
      %p84 = scmp.eq.s32.totalorder %s32, 0
      %p85 = por %p83, %p84
      %s86 = ssub.s32 %s26, %s33
      %p87 = scmp.eq.s32.totalorder %s86, 0
      %s89 = sadd.s32 %s88, 1
      %s90 = scalar_select %p87, %s88, %s89
      %p93 = pneg %p87
      %p94 = scmp.eq.s32.totalorder %s26, 2
      %p95 = por %p93, %p94
      %p96 = scmp.ne.s32.totalorder %s88, %s91
      %p97 = scmp.eq.s32.totalorder %s26, 0
      %p98 = por %p96, %p97
      %p99 = scmp.ne.s32.totalorder %s88, %s91
      %p100 = scmp.eq.s32.totalorder %s31, 2
      %p101 = por %p99, %p100
      %p102 = scmp.ne.s32.totalorder %s91, %s92
      %p103 = scmp.eq.s32.totalorder %s31, 0
      %p104 = por %p102, %p103
      %p105 = scmp.ne.s32.totalorder %s91, %s92
      %p106 = scmp.eq.s32.totalorder %s32, 2
      %p107 = por %p105, %p106
      %p109 = scmp.ne.s32.totalorder %s92, %s108
      %p110 = scmp.eq.s32.totalorder %s32, 0
      %p111 = por %p109, %p110
      %s113 = sadd.s32 %s112, 1
      %p116 = scmp.eq.s32.totalorder %s26, 2
      %p117 = scmp.ne.s32.totalorder %s112, %s114
      %p118 = scmp.eq.s32.totalorder %s26, 0
      %p119 = por %p117, %p118
      %p120 = scmp.ne.s32.totalorder %s112, %s114
      %p121 = scmp.eq.s32.totalorder %s31, 2
      %p122 = por %p120, %p121
      %p123 = scmp.ne.s32.totalorder %s114, %s115
      %p124 = scmp.eq.s32.totalorder %s31, 0
      %p125 = por %p123, %p124
      %p126 = scmp.ne.s32.totalorder %s114, %s115
      %p127 = scmp.eq.s32.totalorder %s32, 2
      %p128 = por %p126, %p127
      %p130 = scmp.ne.s32.totalorder %s115, %s129
      %p131 = scmp.eq.s32.totalorder %s32, 0
      %p132 = por %p130, %p131
      %s133 = ssub.s32 %s26, %s33
      %p134 = scmp.eq.s32.totalorder %s133, 0
      %s136 = sadd.s32 %s135, 1
      %s137 = scalar_select %p134, %s135, %s136
      %p140 = pneg %p134
      %p141 = scmp.eq.s32.totalorder %s26, 2
      %p142 = por %p140, %p141
      %p143 = scmp.ne.s32.totalorder %s135, %s138
      %p144 = scmp.eq.s32.totalorder %s26, 0
      %p145 = por %p143, %p144
      %p146 = scmp.ne.s32.totalorder %s135, %s138
      %p147 = scmp.eq.s32.totalorder %s31, 2
      %p148 = por %p146, %p147
      %p149 = scmp.ne.s32.totalorder %s138, %s139
      %p150 = scmp.eq.s32.totalorder %s31, 0
      %p151 = por %p149, %p150
      %p152 = scmp.ne.s32.totalorder %s138, %s139
      %p153 = scmp.eq.s32.totalorder %s32, 2
      %p154 = por %p152, %p153
      %p156 = scmp.ne.s32.totalorder %s139, %s155
      %p157 = scmp.eq.s32.totalorder %s32, 0
      %p158 = por %p156, %p157
      %s159 = ssub.s32 %s26, %s33
      %p160 = scmp.eq.s32.totalorder %s159, 0
      %s162 = sadd.s32 %s161, 1
      %s163 = scalar_select %p160, %s161, %s162
      %p166 = pneg %p160
      %p167 = scmp.eq.s32.totalorder %s26, 2
      %p168 = por %p166, %p167
      %p169 = scmp.ne.s32.totalorder %s161, %s164
      %p170 = scmp.eq.s32.totalorder %s26, 0
      %p171 = por %p169, %p170
      %p172 = scmp.ne.s32.totalorder %s161, %s164
      %p173 = scmp.eq.s32.totalorder %s31, 2
      %p174 = por %p172, %p173
      %p175 = scmp.ne.s32.totalorder %s164, %s165
      %p176 = scmp.eq.s32.totalorder %s31, 0
      %p177 = por %p175, %p176
      %p178 = scmp.ne.s32.totalorder %s164, %s165
      %p179 = scmp.eq.s32.totalorder %s32, 2
      %p180 = por %p178, %p179
      %p182 = scmp.ne.s32.totalorder %s165, %s181
      %p183 = scmp.eq.s32.totalorder %s32, 0
      %p184 = por %p182, %p183
      %s185 = ssub.s32 %s26, %s33
      %p186 = scmp.eq.s32.totalorder %s185, 0
      %s188 = sadd.s32 %s187, 1
      %s189 = scalar_select %p186, %s187, %s188
      %p192 = pneg %p186
      %p193 = scmp.eq.s32.totalorder %s26, 2
      %p194 = por %p192, %p193
      %p195 = scmp.ne.s32.totalorder %s187, %s190
      %p196 = scmp.eq.s32.totalorder %s26, 0
      %p197 = por %p195, %p196
      %p198 = scmp.ne.s32.totalorder %s187, %s190
      %p199 = scmp.eq.s32.totalorder %s31, 2
      %p200 = por %p198, %p199
      %p201 = scmp.ne.s32.totalorder %s190, %s191
      %p202 = scmp.eq.s32.totalorder %s31, 0
      %p203 = por %p201, %p202
      %p204 = scmp.ne.s32.totalorder %s190, %s191
      %p205 = scmp.eq.s32.totalorder %s32, 2
      %p206 = por %p204, %p205
      %p208 = scmp.ne.s32.totalorder %s191, %s207
      %p209 = scmp.eq.s32.totalorder %s32, 0
      %p210 = por %p208, %p209
      %s211 = ssub.s32 %s26, %s33
      %p212 = scmp.eq.s32.totalorder %s211, 0
      %s214 = sadd.s32 %s213, 1
      %s215 = scalar_select %p212, %s213, %s214
      %p218 = pneg %p212
      %p219 = scmp.eq.s32.totalorder %s26, 2
      %p220 = por %p218, %p219
      %p221 = scmp.ne.s32.totalorder %s213, %s216
      %p222 = scmp.eq.s32.totalorder %s26, 0
      %p223 = por %p221, %p222
      %p224 = scmp.ne.s32.totalorder %s213, %s216
      %p225 = scmp.eq.s32.totalorder %s31, 2
      %p226 = por %p224, %p225
      %p227 = scmp.ne.s32.totalorder %s216, %s217
      %p228 = scmp.eq.s32.totalorder %s31, 0
      %p229 = por %p227, %p228
      %p230 = scmp.ne.s32.totalorder %s216, %s217
      %p231 = scmp.eq.s32.totalorder %s32, 2
      %p232 = por %p230, %p231
      %p234 = scmp.ne.s32.totalorder %s217, %s233
      %p235 = scmp.eq.s32.totalorder %s32, 0
      %p236 = por %p234, %p235
      %p237 = scmp.le.s32.totalorder 1, %s26
      %p238 = scmp.lt.s32.totalorder %s26, 4
      %p239 = pnand %p237, %p238
      %p240 = pneg %p239
      // Predicated region
      $region9: #{tpu_custom_call.1} parent=5 // pred_check
        _
      $region10: #{tpu_custom_call.1} parent=5 // pred_check_branch
        %242 = sbr.rel (%p239) target = $region12
      $region11: #{tpu_custom_call.1} parent=5 // pred_region
        %s243 = ssub.s32 %s26, 1
        // Predicated region
        $region13: #{tpu_custom_call.1} parent=11 // pred_check
          %p244 = pneg %p125
        $region14: #{tpu_custom_call.1} parent=11 // pred_check_branch
          %246 = sbr.rel (%p244) target = $region16
        $region15: #{tpu_custom_call.1} parent=11 // pred_region
          %248 = vsyncadd [#allocation6], 0
          %s250 = sshll.u32 %s3, 4
          %s251 = int_to_ptr.hbm [resolvable:$true] %s250
          %s252 = sshll.u32 [#allocation7], 4
          %s253 = int_to_ptr.vmem [resolvable:$true] %s252
          %255 = dma.hbm_to_vmem [thread:$0]  %s251, 256, %s253, [#allocation6]
        $region16: #{tpu_custom_call.1} parent=11 // pred_fallthru
          _
      $region12: #{tpu_custom_call.1} parent=5 // pred_fallthru
        _
      %p256 = scmp.lt.s32.totalorder %s26, 3
      // Predicated region
      $region17: #{tpu_custom_call.1} parent=5 // pred_check
        %p257 = pneg %p256
      $region18: #{tpu_custom_call.1} parent=5 // pred_check_branch
        %259 = sbr.rel (%p257) target = $region20
      $region19: #{tpu_custom_call.1} parent=5 // pred_region
        // Predicated region
        $region21: #{tpu_custom_call.1} parent=19 // pred_check
          %p260 = pneg %p46
        $region22: #{tpu_custom_call.1} parent=19 // pred_check_branch
          %262 = sbr.rel (%p260) target = $region24
        $region23: #{tpu_custom_call.1} parent=19 // pred_region
          %s263 = sand.u32 %s36, 1
          %s264 = scalar_lea.sflag [#allocation3], %s263
          %s265 = sand.u32 %s36, 1
          %s266 = smul.addr %s265, 64
          %s267 = scalar_lea.vmem [#allocation2], %s266
          %269 = vsyncadd %s264, 0
          %s270 = smul.addr %s26, 8
          %s271 = smul.addr %s270, 8
          %s272 = scalar_lea.hbm %s0, %s271
          %s273 = sshll.u32 %s272, 4
          %s274 = int_to_ptr.hbm [resolvable:$true] %s273
          %s275 = sshll.u32 %s267, 4
          %s276 = int_to_ptr.vmem [resolvable:$true] %s275
          %281 = dma.hbm_to_vmem [thread:$0]  %s274, 1024, %s276, %s264, 128, 128, 8
        $region24: #{tpu_custom_call.1} parent=19 // pred_fallthru
          _
        // Predicated region
        $region25: #{tpu_custom_call.1} parent=19 // pred_check
          %p282 = pneg %p72
        $region26: #{tpu_custom_call.1} parent=19 // pred_check_branch
          %284 = sbr.rel (%p282) target = $region28
        $region27: #{tpu_custom_call.1} parent=19 // pred_region
          %p285 = scmp.lt.s32.totalorder %s26, 2
          %s286 = scalar_select %p285, %s26, 2
          %s287 = smul.addr %s286, 16
          %s288 = smul.addr %s287, 8
          %s289 = scalar_lea.vmem %s1, %s288
        $region28: #{tpu_custom_call.1} parent=19 // pred_fallthru
          _
        // Predicated region
        $region29: #{tpu_custom_call.1} parent=19 // pred_check
          %p290 = pneg %p98
        $region30: #{tpu_custom_call.1} parent=19 // pred_check_branch
          %292 = sbr.rel (%p290) target = $region32
        $region31: #{tpu_custom_call.1} parent=19 // pred_region
          %s293 = sand.u32 %s26, 1
          %s294 = scalar_lea.sflag [#allocation6], %s293
          %s295 = sand.u32 %s88, 1
          %s296 = smul.addr %s295, 16
          %s297 = scalar_lea.vmem [#allocation5], %s296
          %299 = vsyncadd %s294, 0
          %s300 = smul.addr %s26, 2
          %s301 = smul.addr %s300, 8
          %s302 = scalar_lea.hbm %s2, %s301
          %s304 = sshll.u32 %s302, 4
          %s305 = int_to_ptr.hbm [resolvable:$true] %s304
          %s306 = sshll.u32 %s297, 4
          %s307 = int_to_ptr.vmem [resolvable:$true] %s306
          %309 = dma.hbm_to_vmem [thread:$0]  %s305, 256, %s307, %s294
        $region32: #{tpu_custom_call.1} parent=19 // pred_fallthru
          _
        // Predicated region
        $region33: #{tpu_custom_call.1} parent=19 // pred_check
          %p310 = pneg %p145
        $region34: #{tpu_custom_call.1} parent=19 // pred_check_branch
          %312 = sbr.rel (%p310) target = $region36
        $region35: #{tpu_custom_call.1} parent=19 // pred_region
          %p313 = scmp.lt.s32.totalorder %s26, 2
          %s314 = scalar_select %p313, %s26, 2
          %s315 = smul.addr %s314, 8
          %s316 = smul.addr %s315, 8
          %s317 = scalar_lea.vmem %s4, %s316
        $region36: #{tpu_custom_call.1} parent=19 // pred_fallthru
          _
        // Predicated region
        $region37: #{tpu_custom_call.1} parent=19 // pred_check
          %p318 = pneg %p171
        $region38: #{tpu_custom_call.1} parent=19 // pred_check_branch
          %320 = sbr.rel (%p318) target = $region40
        $region39: #{tpu_custom_call.1} parent=19 // pred_region
          %p321 = scmp.lt.s32.totalorder %s26, 2
          %s322 = scalar_select %p321, %s26, 2
          %s323 = smul.addr %s322, 8
          %s324 = smul.addr %s323, 8
          %s325 = scalar_lea.vmem %s5, %s324
        $region40: #{tpu_custom_call.1} parent=19 // pred_fallthru
          _
      $region20: #{tpu_custom_call.1} parent=5 // pred_fallthru
        _
      %p326 = scmp.le.s32.totalorder 1, %s26
      %p327 = scmp.lt.s32.totalorder %s26, 4
      %p328 = pnand %p326, %p327
      %p329 = pneg %p328
      // Predicated region
      $region41: #{tpu_custom_call.1} parent=5 // pred_check
        _
      $region42: #{tpu_custom_call.1} parent=5 // pred_check_branch
        %331 = sbr.rel (%p328) target = $region44
      $region43: #{tpu_custom_call.1} parent=5 // pred_region
        %s332 = ssub.s32 %s26, 1
        %s333 = sand.u32 %s39, 1
        %s334 = scalar_lea.sflag [#allocation3], %s333
        %s335 = sand.u32 %s39, 1
        %s336 = smul.addr %s335, 64
        %s337 = scalar_lea.vmem [#allocation2], %s336
        // Predicated region
        $region45: #{tpu_custom_call.1} parent=43 // pred_check
          %p338 = pneg %p52
        $region46: #{tpu_custom_call.1} parent=43 // pred_check_branch
          %340 = sbr.rel (%p338) target = $region48
        $region47: #{tpu_custom_call.1} parent=43 // pred_region
          %342 = dma.done %s334, 1024
        $region48: #{tpu_custom_call.1} parent=43 // pred_fallthru
          _
        %s343 = sand.u32 %s31, 1
        %s344 = scalar_lea.sflag [#allocation6], %s343
        %s345 = sand.u32 %s91, 1
        %s346 = smul.addr %s345, 16
        %s347 = scalar_lea.vmem [#allocation5], %s346
        // Predicated region
        $region49: #{tpu_custom_call.1} parent=43 // pred_check
          %p348 = pneg %p104
        $region50: #{tpu_custom_call.1} parent=43 // pred_check_branch
          %350 = sbr.rel (%p348) target = $region52
        $region51: #{tpu_custom_call.1} parent=43 // pred_region
          %352 = dma.done %s344, 256
        $region52: #{tpu_custom_call.1} parent=43 // pred_fallthru
          _
        // Predicated region
        $region53: #{tpu_custom_call.1} parent=43 // pred_check
          %p353 = pneg %p125
        $region54: #{tpu_custom_call.1} parent=43 // pred_check_branch
          %355 = sbr.rel (%p353) target = $region56
        $region55: #{tpu_custom_call.1} parent=43 // pred_region
          %357 = dma.done [#allocation6], 256
        $region56: #{tpu_custom_call.1} parent=43 // pred_fallthru
          _
        %s358 = sand.u32 %s39, 1
        %s359 = scalar_lea.sflag [#allocation3], %s358
        %s360 = sand.u32 %s39, 1
        %s361 = smul.addr %s360, 64
        %s362 = scalar_lea.vmem [#allocation2], %s361
        %p363 = pneg %p52
        %p364 = pneg %p49
        %p365 = scmp.lt.s32.totalorder %s31, 2
        %s366 = scalar_select %p365, %s31, 2
        %s367 = smul.addr %s366, 16
        %s368 = smul.addr %s367, 8
        %s369 = scalar_lea.vmem %s1, %s368
        %p370 = pneg %p78
        %p371 = pneg %p75
        %s372 = sand.u32 %s31, 1
        %s373 = scalar_lea.sflag [#allocation6], %s372
        %s374 = sand.u32 %s91, 1
        %s375 = smul.addr %s374, 16
        %s376 = scalar_lea.vmem [#allocation5], %s375
        %p377 = pneg %p104
        %p378 = pneg %p101
        %p379 = pneg %p125
        %p380 = pneg %p122
        %p381 = scmp.lt.s32.totalorder %s31, 2
        %s382 = scalar_select %p381, %s31, 2
        %s383 = smul.addr %s382, 8
        %s384 = smul.addr %s383, 8
        %s385 = scalar_lea.vmem %s4, %s384
        %p386 = pneg %p151
        %p387 = pneg %p148
        %p388 = scmp.lt.s32.totalorder %s31, 2
        %s389 = scalar_select %p388, %s31, 2
        %s390 = smul.addr %s389, 8
        %s391 = smul.addr %s390, 8
        %s392 = scalar_lea.vmem %s5, %s391
        %p393 = pneg %p177
        %p394 = pneg %p174
        %p395 = pneg %p203
        %p396 = pneg %p200
        %s397 = sand.u32 %s190, 1
        %s398 = scalar_lea.sflag [#allocation4], %s397
        %s399 = sand.u32 %s190, 1
        %s400 = smul.addr %s399, 128
        %s401 = scalar_lea.vmem [#allocation8], %s400
        %p402 = pneg %p229
        %p403 = pneg %p226
        %s404 = sand.u32 %s216, 1
        %s405 = scalar_lea.sflag [#allocation10], %s404
        %s406 = sand.u32 %s216, 1
        %s407 = smul.addr %s406, 128
        %s408 = scalar_lea.vmem [#allocation9], %s407
        %p409 = scmp.lt.s32.totalorder %s31, 2
        %s410 = scalar_select %p409, %s31, 2
        %s411 = smul.addr %s410, 16
        %s412 = smul.addr %s411, 8
        %s413 = scalar_lea.vmem %s1, %s412
        %p414 = scmp.lt.s32.totalorder %s31, 2
        %s415 = scalar_select %p414, %s31, 2
        %s416 = smul.addr %s415, 8
        %s417 = smul.addr %s416, 8
        %s418 = scalar_lea.vmem %s4, %s417
        %p419 = scmp.lt.s32.totalorder %s31, 2
        %s420 = scalar_select %p419, %s31, 2
        %s421 = smul.addr %s420, 8
        %s422 = smul.addr %s421, 8
        %s423 = scalar_lea.vmem %s5, %s422
        %v424 = vld [vmem:[%s347] sm:$0xff]
        %v425 = vld [vmem:[%s347 + $0x8] sm:$0xff]
        %v426 = vld [vmem:[%s337] sm:$0xff]
        %v427 = vld [vmem:[%s337 + $0x8] sm:$0xff]
        %v428 = vld [vmem:[%s337 + $0x10] sm:$0xff]
        %v429 = vld [vmem:[%s337 + $0x18] sm:$0xff]
        %v430 = vld [vmem:[%s337 + $0x20] sm:$0xff]
        %v431 = vld [vmem:[%s337 + $0x28] sm:$0xff]
        %v432 = vld [vmem:[%s337 + $0x30] sm:$0xff]
        %v433 = vld [vmem:[%s337 + $0x38] sm:$0xff]
        %v434 = vld [vmem:[%s413] sm:$0xff]
        %v435 = vld [vmem:[%s413 + $0x8] sm:$0xff]
        %v436 = vld [vmem:[%s413 + $0x10] sm:$0xff]
        %v437 = vld [vmem:[%s413 + $0x18] sm:$0xff]
        %v438 = vld [vmem:[%s413 + $0x20] sm:$0xff]
        %v439 = vld [vmem:[%s413 + $0x28] sm:$0xff]
        %v440 = vld [vmem:[%s413 + $0x30] sm:$0xff]
        %v441 = vld [vmem:[%s413 + $0x38] sm:$0xff]
        %v442 = vld [vmem:[%s413 + $0x40] sm:$0xff]
        %v443 = vld [vmem:[%s413 + $0x48] sm:$0xff]
        %v444 = vld [vmem:[%s413 + $0x50] sm:$0xff]
        %v445 = vld [vmem:[%s413 + $0x58] sm:$0xff]
        %v446 = vld [vmem:[%s413 + $0x60] sm:$0xff]
        %v447 = vld [vmem:[%s413 + $0x68] sm:$0xff]
        %v448 = vld [vmem:[%s413 + $0x70] sm:$0xff]
        %v449 = vld [vmem:[%s413 + $0x78] sm:$0xff]
        %v450 = vperm.slane %v424, 0
        %v451 = vperm.slane %v425, 0
        %vm452 = vcmask 523264
        %v454 = vsel %vm452, %v426, 0
        %v457 = vsel %vm452, %v427, 0
        %v460 = vsel %vm452, %v428, 0
        %v463 = vsel %vm452, %v429, 0
        %v466 = vsel %vm452, %v430, 0
        %v469 = vsel %vm452, %v431, 0
        %v472 = vsel %vm452, %v432, 0
        %v475 = vsel %vm452, %v433, 0
        %477 = vmatpush.msra.mxu0 0.0
        %478 = vmatpush.msra.mxu0 0.0
        %479 = vmatpush.msra.mxu0 0.0
        %480 = vmatpush.msra.mxu0 0.0
        %481 = vmatpush.msra.mxu0 0.0
        %482 = vmatpush.msra.mxu0 0.0
        %483 = vmatpush.msra.mxu0 0.0
        %484 = vmatpush.msra.mxu0 0.0
        %485 = vmatpush.msra.mxu0 %v448
        %486 = vmatpush.msra.mxu0 %v446
        %487 = vmatpush.msra.mxu0 %v444
        %488 = vmatpush.msra.mxu0 %v442
        %489 = vmatpush.msra.mxu0 %v440
        %490 = vmatpush.msra.mxu0 %v438
        %491 = vmatpush.msra.mxu0 %v436
        %492 = vmatpush.msra.mxu0 %v434
        %493 = vmatmul.f32.gmra.mxu0 %v454
        %v494 = vpop.f32.mrf.mxu0
        %v495 = vadd.f32 %v450, %v494
        %496 = vmatmul.f32.gmra.mxu0 %v457
        %v497 = vpop.f32.mrf.mxu0
        %v498 = vadd.f32 %v450, %v497
        %499 = vmatmul.f32.gmra.mxu0 %v460
        %v500 = vpop.f32.mrf.mxu0
        %v501 = vadd.f32 %v450, %v500
        %502 = vmatmul.f32.gmra.mxu0 %v463
        %v503 = vpop.f32.mrf.mxu0
        %v504 = vadd.f32 %v450, %v503
        %505 = vmatmul.f32.gmra.mxu0 %v466
        %v506 = vpop.f32.mrf.mxu0
        %v507 = vadd.f32 %v450, %v506
        %508 = vmatmul.f32.gmra.mxu0 %v469
        %v509 = vpop.f32.mrf.mxu0
        %v510 = vadd.f32 %v450, %v509
        %511 = vmatmul.f32.gmra.mxu0 %v472
        %v512 = vpop.f32.mrf.mxu0
        %v513 = vadd.f32 %v450, %v512
        %514 = vmatmul.f32.gmra.mxu0 %v475
        %v515 = vpop.f32.mrf.mxu0
        %v516 = vadd.f32 %v450, %v515
        %517 = vdwg.mxu0
        %518 = vmatpush.msra.mxu0 0.0
        %519 = vmatpush.msra.mxu0 0.0
        %520 = vmatpush.msra.mxu0 0.0
        %521 = vmatpush.msra.mxu0 0.0
        %522 = vmatpush.msra.mxu0 0.0
        %523 = vmatpush.msra.mxu0 0.0
        %524 = vmatpush.msra.mxu0 0.0
        %525 = vmatpush.msra.mxu0 0.0
        %526 = vmatpush.msra.mxu0 %v449
        %527 = vmatpush.msra.mxu0 %v447
        %528 = vmatpush.msra.mxu0 %v445
        %529 = vmatpush.msra.mxu0 %v443
        %530 = vmatpush.msra.mxu0 %v441
        %531 = vmatpush.msra.mxu0 %v439
        %532 = vmatpush.msra.mxu0 %v437
        %533 = vmatpush.msra.mxu0 %v435
        %534 = vmatmul.f32.gmra.mxu0 %v454
        %v535 = vpop.f32.mrf.mxu0
        %v536 = vadd.f32 %v451, %v535
        %537 = vmatmul.f32.gmra.mxu0 %v457
        %v538 = vpop.f32.mrf.mxu0
        %v539 = vadd.f32 %v451, %v538
        %540 = vmatmul.f32.gmra.mxu0 %v460
        %v541 = vpop.f32.mrf.mxu0
        %v542 = vadd.f32 %v451, %v541
        %543 = vmatmul.f32.gmra.mxu0 %v463
        %v544 = vpop.f32.mrf.mxu0
        %v545 = vadd.f32 %v451, %v544
        %546 = vmatmul.f32.gmra.mxu0 %v466
        %v547 = vpop.f32.mrf.mxu0
        %v548 = vadd.f32 %v451, %v547
        %549 = vmatmul.f32.gmra.mxu0 %v469
        %v550 = vpop.f32.mrf.mxu0
        %v551 = vadd.f32 %v451, %v550
        %552 = vmatmul.f32.gmra.mxu0 %v472
        %v553 = vpop.f32.mrf.mxu0
        %v554 = vadd.f32 %v451, %v553
        %555 = vmatmul.f32.gmra.mxu0 %v475
        %v556 = vpop.f32.mrf.mxu0
        %v557 = vadd.f32 %v451, %v556
        %558 = vdwg.mxu0
        %559 = vst [vmem:[%s408] sm:$0xff] %v495
        %560 = vst [vmem:[%s408 + $0x8] sm:$0xff] %v536
        %561 = vst [vmem:[%s408 + $0x10] sm:$0xff] %v498
        %562 = vst [vmem:[%s408 + $0x18] sm:$0xff] %v539
        %563 = vst [vmem:[%s408 + $0x20] sm:$0xff] %v501
        %564 = vst [vmem:[%s408 + $0x28] sm:$0xff] %v542
        %565 = vst [vmem:[%s408 + $0x30] sm:$0xff] %v504
        %566 = vst [vmem:[%s408 + $0x38] sm:$0xff] %v545
        %567 = vst [vmem:[%s408 + $0x40] sm:$0xff] %v507
        %568 = vst [vmem:[%s408 + $0x48] sm:$0xff] %v548
        %569 = vst [vmem:[%s408 + $0x50] sm:$0xff] %v510
        %570 = vst [vmem:[%s408 + $0x58] sm:$0xff] %v551
        %571 = vst [vmem:[%s408 + $0x60] sm:$0xff] %v513
        %572 = vst [vmem:[%s408 + $0x68] sm:$0xff] %v554
        %573 = vst [vmem:[%s408 + $0x70] sm:$0xff] %v516
        %574 = vst [vmem:[%s408 + $0x78] sm:$0xff] %v557
        %v575 = vxor.u32 %v495, 2147483648
        %v576 = vxor.u32 %v536, 2147483648
        %v577 = vxor.u32 %v498, 2147483648
        %v578 = vxor.u32 %v539, 2147483648
        %v579 = vxor.u32 %v501, 2147483648
        %v580 = vxor.u32 %v542, 2147483648
        %v581 = vxor.u32 %v504, 2147483648
        %v582 = vxor.u32 %v545, 2147483648
        %v583 = vxor.u32 %v507, 2147483648
        %v584 = vxor.u32 %v548, 2147483648
        %v585 = vxor.u32 %v510, 2147483648
        %v586 = vxor.u32 %v551, 2147483648
        %v587 = vxor.u32 %v513, 2147483648
        %v588 = vxor.u32 %v554, 2147483648
        %v589 = vxor.u32 %v516, 2147483648
        %v590 = vxor.u32 %v557, 2147483648
        %v591 = vmul.f32 %v575, 1.442695
        %v592 = vpow.pop %v591
        %v593 = vmul.f32 %v576, 1.442695
        %v594 = vpow.pop %v593
        %v595 = vmul.f32 %v577, 1.442695
        %v596 = vpow.pop %v595
        %v597 = vmul.f32 %v578, 1.442695
        %v598 = vpow.pop %v597
        %v599 = vmul.f32 %v579, 1.442695
        %v600 = vpow.pop %v599
        %v601 = vmul.f32 %v580, 1.442695
        %v602 = vpow.pop %v601
        %v603 = vmul.f32 %v581, 1.442695
        %v604 = vpow.pop %v603
        %v605 = vmul.f32 %v582, 1.442695
        %v606 = vpow.pop %v605
        %v607 = vmul.f32 %v583, 1.442695
        %v608 = vpow.pop %v607
        %v609 = vmul.f32 %v584, 1.442695
        %v610 = vpow.pop %v609
        %v611 = vmul.f32 %v585, 1.442695
        %v612 = vpow.pop %v611
        %v613 = vmul.f32 %v586, 1.442695
        %v614 = vpow.pop %v613
        %v615 = vmul.f32 %v587, 1.442695
        %v616 = vpow.pop %v615
        %v617 = vmul.f32 %v588, 1.442695
        %v618 = vpow.pop %v617
        %v619 = vmul.f32 %v589, 1.442695
        %v620 = vpow.pop %v619
        %v621 = vmul.f32 %v590, 1.442695
        %v622 = vpow.pop %v621
        %v623 = vadd.f32 %v592, 1.0
        %v624 = vadd.f32 %v594, 1.0
        %v625 = vadd.f32 %v596, 1.0
        %v626 = vadd.f32 %v598, 1.0
        %v627 = vadd.f32 %v600, 1.0
        %v628 = vadd.f32 %v602, 1.0
        %v629 = vadd.f32 %v604, 1.0
        %v630 = vadd.f32 %v606, 1.0
        %v631 = vadd.f32 %v608, 1.0
        %v632 = vadd.f32 %v610, 1.0
        %v633 = vadd.f32 %v612, 1.0
        %v634 = vadd.f32 %v614, 1.0
        %v635 = vadd.f32 %v616, 1.0
        %v636 = vadd.f32 %v618, 1.0
        %v637 = vadd.f32 %v620, 1.0
        %v638 = vadd.f32 %v622, 1.0
        %v639 = vrcp.pop %v623
        %v640 = vmul.f32 %v623, %v639
        %v641 = vsub.f32 1.0, %v640
        %v642 = vmul.f32 %v639, %v641
        %v643 = vadd.f32 %v639, %v642
        %vm644 = vweird.f32 %v623
        %vm645 = vweird.f32 %v639
        %vm646 = vmor %vm644, %vm645
        %v647 = vsel %vm646, %v639, %v643
        %v648 = vand.u32 2147483647, %v623
        %vm649 = vcmp.eq.f32.partialorder %v648, 8.507059e+37
        %v650 = vand.u32 %v623, 2147483648
        %v651 = vor.u32 1.1754944e-38, %v650
        %v652 = vsel %vm649, %v651, %v647
        %v653 = vmul.f32 1.0, %v652
        %v654 = vrcp.pop %v624
        %v655 = vmul.f32 %v624, %v654
        %v656 = vsub.f32 1.0, %v655
        %v657 = vmul.f32 %v654, %v656
        %v658 = vadd.f32 %v654, %v657
        %vm659 = vweird.f32 %v624
        %vm660 = vweird.f32 %v654
        %vm661 = vmor %vm659, %vm660
        %v662 = vsel %vm661, %v654, %v658
        %v663 = vand.u32 2147483647, %v624
        %vm664 = vcmp.eq.f32.partialorder %v663, 8.507059e+37
        %v665 = vand.u32 %v624, 2147483648
        %v666 = vor.u32 1.1754944e-38, %v665
        %v667 = vsel %vm664, %v666, %v662
        %v668 = vmul.f32 1.0, %v667
        %v669 = vrcp.pop %v625
        %v670 = vmul.f32 %v625, %v669
        %v671 = vsub.f32 1.0, %v670
        %v672 = vmul.f32 %v669, %v671
        %v673 = vadd.f32 %v669, %v672
        %vm674 = vweird.f32 %v625
        %vm675 = vweird.f32 %v669
        %vm676 = vmor %vm674, %vm675
        %v677 = vsel %vm676, %v669, %v673
        %v678 = vand.u32 2147483647, %v625
        %vm679 = vcmp.eq.f32.partialorder %v678, 8.507059e+37
        %v680 = vand.u32 %v625, 2147483648
        %v681 = vor.u32 1.1754944e-38, %v680
        %v682 = vsel %vm679, %v681, %v677
        %v683 = vmul.f32 1.0, %v682
        %v684 = vrcp.pop %v626
        %v685 = vmul.f32 %v626, %v684
        %v686 = vsub.f32 1.0, %v685
        %v687 = vmul.f32 %v684, %v686
        %v688 = vadd.f32 %v684, %v687
        %vm689 = vweird.f32 %v626
        %vm690 = vweird.f32 %v684
        %vm691 = vmor %vm689, %vm690
        %v692 = vsel %vm691, %v684, %v688
        %v693 = vand.u32 2147483647, %v626
        %vm694 = vcmp.eq.f32.partialorder %v693, 8.507059e+37
        %v695 = vand.u32 %v626, 2147483648
        %v696 = vor.u32 1.1754944e-38, %v695
        %v697 = vsel %vm694, %v696, %v692
        %v698 = vmul.f32 1.0, %v697
        %v699 = vrcp.pop %v627
        %v700 = vmul.f32 %v627, %v699
        %v701 = vsub.f32 1.0, %v700
        %v702 = vmul.f32 %v699, %v701
        %v703 = vadd.f32 %v699, %v702
        %vm704 = vweird.f32 %v627
        %vm705 = vweird.f32 %v699
        %vm706 = vmor %vm704, %vm705
        %v707 = vsel %vm706, %v699, %v703
        %v708 = vand.u32 2147483647, %v627
        %vm709 = vcmp.eq.f32.partialorder %v708, 8.507059e+37
        %v710 = vand.u32 %v627, 2147483648
        %v711 = vor.u32 1.1754944e-38, %v710
        %v712 = vsel %vm709, %v711, %v707
        %v713 = vmul.f32 1.0, %v712
        %v714 = vrcp.pop %v628
        %v715 = vmul.f32 %v628, %v714
        %v716 = vsub.f32 1.0, %v715
        %v717 = vmul.f32 %v714, %v716
        %v718 = vadd.f32 %v714, %v717
        %vm719 = vweird.f32 %v628
        %vm720 = vweird.f32 %v714
        %vm721 = vmor %vm719, %vm720
        %v722 = vsel %vm721, %v714, %v718
        %v723 = vand.u32 2147483647, %v628
        %vm724 = vcmp.eq.f32.partialorder %v723, 8.507059e+37
        %v725 = vand.u32 %v628, 2147483648
        %v726 = vor.u32 1.1754944e-38, %v725
        %v727 = vsel %vm724, %v726, %v722
        %v728 = vmul.f32 1.0, %v727
        %v729 = vrcp.pop %v629
        %v730 = vmul.f32 %v629, %v729
        %v731 = vsub.f32 1.0, %v730
        %v732 = vmul.f32 %v729, %v731
        %v733 = vadd.f32 %v729, %v732
        %vm734 = vweird.f32 %v629
        %vm735 = vweird.f32 %v729
        %vm736 = vmor %vm734, %vm735
        %v737 = vsel %vm736, %v729, %v733
        %v738 = vand.u32 2147483647, %v629
        %vm739 = vcmp.eq.f32.partialorder %v738, 8.507059e+37
        %v740 = vand.u32 %v629, 2147483648
        %v741 = vor.u32 1.1754944e-38, %v740
        %v742 = vsel %vm739, %v741, %v737
        %v743 = vmul.f32 1.0, %v742
        %v744 = vrcp.pop %v630
        %v745 = vmul.f32 %v630, %v744
        %v746 = vsub.f32 1.0, %v745
        %v747 = vmul.f32 %v744, %v746
        %v748 = vadd.f32 %v744, %v747
        %vm749 = vweird.f32 %v630
        %vm750 = vweird.f32 %v744
        %vm751 = vmor %vm749, %vm750
        %v752 = vsel %vm751, %v744, %v748
        %v753 = vand.u32 2147483647, %v630
        %vm754 = vcmp.eq.f32.partialorder %v753, 8.507059e+37
        %v755 = vand.u32 %v630, 2147483648
        %v756 = vor.u32 1.1754944e-38, %v755
        %v757 = vsel %vm754, %v756, %v752
        %v758 = vmul.f32 1.0, %v757
        %v759 = vrcp.pop %v631
        %v760 = vmul.f32 %v631, %v759
        %v761 = vsub.f32 1.0, %v760
        %v762 = vmul.f32 %v759, %v761
        %v763 = vadd.f32 %v759, %v762
        %vm764 = vweird.f32 %v631
        %vm765 = vweird.f32 %v759
        %vm766 = vmor %vm764, %vm765
        %v767 = vsel %vm766, %v759, %v763
        %v768 = vand.u32 2147483647, %v631
        %vm769 = vcmp.eq.f32.partialorder %v768, 8.507059e+37
        %v770 = vand.u32 %v631, 2147483648
        %v771 = vor.u32 1.1754944e-38, %v770
        %v772 = vsel %vm769, %v771, %v767
        %v773 = vmul.f32 1.0, %v772
        %v774 = vrcp.pop %v632
        %v775 = vmul.f32 %v632, %v774
        %v776 = vsub.f32 1.0, %v775
        %v777 = vmul.f32 %v774, %v776
        %v778 = vadd.f32 %v774, %v777
        %vm779 = vweird.f32 %v632
        %vm780 = vweird.f32 %v774
        %vm781 = vmor %vm779, %vm780
        %v782 = vsel %vm781, %v774, %v778
        %v783 = vand.u32 2147483647, %v632
        %vm784 = vcmp.eq.f32.partialorder %v783, 8.507059e+37
        %v785 = vand.u32 %v632, 2147483648
        %v786 = vor.u32 1.1754944e-38, %v785
        %v787 = vsel %vm784, %v786, %v782
        %v788 = vmul.f32 1.0, %v787
        %v789 = vrcp.pop %v633
        %v790 = vmul.f32 %v633, %v789
        %v791 = vsub.f32 1.0, %v790
        %v792 = vmul.f32 %v789, %v791
        %v793 = vadd.f32 %v789, %v792
        %vm794 = vweird.f32 %v633
        %vm795 = vweird.f32 %v789
        %vm796 = vmor %vm794, %vm795
        %v797 = vsel %vm796, %v789, %v793
        %v798 = vand.u32 2147483647, %v633
        %vm799 = vcmp.eq.f32.partialorder %v798, 8.507059e+37
        %v800 = vand.u32 %v633, 2147483648
        %v801 = vor.u32 1.1754944e-38, %v800
        %v802 = vsel %vm799, %v801, %v797
        %v803 = vmul.f32 1.0, %v802
        %v804 = vrcp.pop %v634
        %v805 = vmul.f32 %v634, %v804
        %v806 = vsub.f32 1.0, %v805
        %v807 = vmul.f32 %v804, %v806
        %v808 = vadd.f32 %v804, %v807
        %vm809 = vweird.f32 %v634
        %vm810 = vweird.f32 %v804
        %vm811 = vmor %vm809, %vm810
        %v812 = vsel %vm811, %v804, %v808
        %v813 = vand.u32 2147483647, %v634
        %vm814 = vcmp.eq.f32.partialorder %v813, 8.507059e+37
        %v815 = vand.u32 %v634, 2147483648
        %v816 = vor.u32 1.1754944e-38, %v815
        %v817 = vsel %vm814, %v816, %v812
        %v818 = vmul.f32 1.0, %v817
        %v819 = vrcp.pop %v635
        %v820 = vmul.f32 %v635, %v819
        %v821 = vsub.f32 1.0, %v820
        %v822 = vmul.f32 %v819, %v821
        %v823 = vadd.f32 %v819, %v822
        %vm824 = vweird.f32 %v635
        %vm825 = vweird.f32 %v819
        %vm826 = vmor %vm824, %vm825
        %v827 = vsel %vm826, %v819, %v823
        %v828 = vand.u32 2147483647, %v635
        %vm829 = vcmp.eq.f32.partialorder %v828, 8.507059e+37
        %v830 = vand.u32 %v635, 2147483648
        %v831 = vor.u32 1.1754944e-38, %v830
        %v832 = vsel %vm829, %v831, %v827
        %v833 = vmul.f32 1.0, %v832
        %v834 = vrcp.pop %v636
        %v835 = vmul.f32 %v636, %v834
        %v836 = vsub.f32 1.0, %v835
        %v837 = vmul.f32 %v834, %v836
        %v838 = vadd.f32 %v834, %v837
        %vm839 = vweird.f32 %v636
        %vm840 = vweird.f32 %v834
        %vm841 = vmor %vm839, %vm840
        %v842 = vsel %vm841, %v834, %v838
        %v843 = vand.u32 2147483647, %v636
        %vm844 = vcmp.eq.f32.partialorder %v843, 8.507059e+37
        %v845 = vand.u32 %v636, 2147483648
        %v846 = vor.u32 1.1754944e-38, %v845
        %v847 = vsel %vm844, %v846, %v842
        %v848 = vmul.f32 1.0, %v847
        %v849 = vrcp.pop %v637
        %v850 = vmul.f32 %v637, %v849
        %v851 = vsub.f32 1.0, %v850
        %v852 = vmul.f32 %v849, %v851
        %v853 = vadd.f32 %v849, %v852
        %vm854 = vweird.f32 %v637
        %vm855 = vweird.f32 %v849
        %vm856 = vmor %vm854, %vm855
        %v857 = vsel %vm856, %v849, %v853
        %v858 = vand.u32 2147483647, %v637
        %vm859 = vcmp.eq.f32.partialorder %v858, 8.507059e+37
        %v860 = vand.u32 %v637, 2147483648
        %v861 = vor.u32 1.1754944e-38, %v860
        %v862 = vsel %vm859, %v861, %v857
        %v863 = vmul.f32 1.0, %v862
        %v864 = vrcp.pop %v638
        %v865 = vmul.f32 %v638, %v864
        %v866 = vsub.f32 1.0, %v865
        %v867 = vmul.f32 %v864, %v866
        %v868 = vadd.f32 %v864, %v867
        %vm869 = vweird.f32 %v638
        %vm870 = vweird.f32 %v864
        %vm871 = vmor %vm869, %vm870
        %v872 = vsel %vm871, %v864, %v868
        %v873 = vand.u32 2147483647, %v638
        %vm874 = vcmp.eq.f32.partialorder %v873, 8.507059e+37
        %v875 = vand.u32 %v638, 2147483648
        %v876 = vor.u32 1.1754944e-38, %v875
        %v877 = vsel %vm874, %v876, %v872
        %v878 = vmul.f32 1.0, %v877
        %v879 = vld [vmem:[#allocation7] ss:$8 sm:$0x3]
        %v880 = vld [vmem:[%s418] sm:$0xff]
        %v881 = vld [vmem:[%s418 + $0x8] sm:$0xff]
        %v882 = vld [vmem:[%s418 + $0x10] sm:$0xff]
        %v883 = vld [vmem:[%s418 + $0x18] sm:$0xff]
        %v884 = vld [vmem:[%s418 + $0x20] sm:$0xff]
        %v885 = vld [vmem:[%s418 + $0x28] sm:$0xff]
        %v886 = vld [vmem:[%s418 + $0x30] sm:$0xff]
        %v887 = vld [vmem:[%s418 + $0x38] sm:$0xff]
        %v889 = vperm.slane %v879, 0
        %v890 = vperm.slane %v879, 1
        %894 = vset.pattern.permute.xlu0 0
        %895 = vperm.xlu0 %894, %v880
        %v896 = vpop.permute.xlu0 %895
        %899 = vset.pattern.permute.xlu0 0
        %900 = vperm.xlu0 %899, %v881
        %v901 = vpop.permute.xlu0 %900
        %904 = vset.pattern.permute.xlu0 0
        %905 = vperm.xlu0 %904, %v882
        %v906 = vpop.permute.xlu0 %905
        %909 = vset.pattern.permute.xlu0 0
        %910 = vperm.xlu0 %909, %v883
        %v911 = vpop.permute.xlu0 %910
        %914 = vset.pattern.permute.xlu0 0
        %915 = vperm.xlu0 %914, %v884
        %v916 = vpop.permute.xlu0 %915
        %919 = vset.pattern.permute.xlu0 0
        %920 = vperm.xlu0 %919, %v885
        %v921 = vpop.permute.xlu0 %920
        %924 = vset.pattern.permute.xlu0 0
        %925 = vperm.xlu0 %924, %v886
        %v926 = vpop.permute.xlu0 %925
        %929 = vset.pattern.permute.xlu0 0
        %930 = vperm.xlu0 %929, %v887
        %v931 = vpop.permute.xlu0 %930
        %v933 = vmul.f32 %v889, %v896
        %v934 = vmul.f32 %v890, %v896
        %v935 = vmul.f32 %v889, %v901
        %v936 = vmul.f32 %v890, %v901
        %v937 = vmul.f32 %v889, %v906
        %v938 = vmul.f32 %v890, %v906
        %v939 = vmul.f32 %v889, %v911
        %v940 = vmul.f32 %v890, %v911
        %v941 = vmul.f32 %v889, %v916
        %v942 = vmul.f32 %v890, %v916
        %v943 = vmul.f32 %v889, %v921
        %v944 = vmul.f32 %v890, %v921
        %v945 = vmul.f32 %v889, %v926
        %v946 = vmul.f32 %v890, %v926
        %v947 = vmul.f32 %v889, %v931
        %v948 = vmul.f32 %v890, %v931
        %s949 = scalar_lea.vmem [#allocation7], 1
        %v950 = vld [vmem:[%s949] ss:$8 sm:$0x3]
        %v951 = vld [vmem:[%s423] sm:$0xff]
        %v952 = vld [vmem:[%s423 + $0x8] sm:$0xff]
        %v953 = vld [vmem:[%s423 + $0x10] sm:$0xff]
        %v954 = vld [vmem:[%s423 + $0x18] sm:$0xff]
        %v955 = vld [vmem:[%s423 + $0x20] sm:$0xff]
        %v956 = vld [vmem:[%s423 + $0x28] sm:$0xff]
        %v957 = vld [vmem:[%s423 + $0x30] sm:$0xff]
        %v958 = vld [vmem:[%s423 + $0x38] sm:$0xff]
        %v960 = vperm.slane %v950, 0
        %v961 = vperm.slane %v950, 1
        %965 = vset.pattern.permute.xlu0 0
        %966 = vperm.xlu0 %965, %v951
        %v967 = vpop.permute.xlu0 %966
        %970 = vset.pattern.permute.xlu0 0
        %971 = vperm.xlu0 %970, %v952
        %v972 = vpop.permute.xlu0 %971
        %975 = vset.pattern.permute.xlu0 0
        %976 = vperm.xlu0 %975, %v953
        %v977 = vpop.permute.xlu0 %976
        %980 = vset.pattern.permute.xlu0 0
        %981 = vperm.xlu0 %980, %v954
        %v982 = vpop.permute.xlu0 %981
        %985 = vset.pattern.permute.xlu0 0
        %986 = vperm.xlu0 %985, %v955
        %v987 = vpop.permute.xlu0 %986
        %990 = vset.pattern.permute.xlu0 0
        %991 = vperm.xlu0 %990, %v956
        %v992 = vpop.permute.xlu0 %991
        %995 = vset.pattern.permute.xlu0 0
        %996 = vperm.xlu0 %995, %v957
        %v997 = vpop.permute.xlu0 %996
        %1000 = vset.pattern.permute.xlu0 0
        %1001 = vperm.xlu0 %1000, %v958
        %v1002 = vpop.permute.xlu0 %1001
        %v1004 = vmul.f32 %v960, %v967
        %v1005 = vmul.f32 %v961, %v967
        %v1006 = vmul.f32 %v960, %v972
        %v1007 = vmul.f32 %v961, %v972
        %v1008 = vmul.f32 %v960, %v977
        %v1009 = vmul.f32 %v961, %v977
        %v1010 = vmul.f32 %v960, %v982
        %v1011 = vmul.f32 %v961, %v982
        %v1012 = vmul.f32 %v960, %v987
        %v1013 = vmul.f32 %v961, %v987
        %v1014 = vmul.f32 %v960, %v992
        %v1015 = vmul.f32 %v961, %v992
        %v1016 = vmul.f32 %v960, %v997
        %v1017 = vmul.f32 %v961, %v997
        %v1018 = vmul.f32 %v960, %v1002
        %v1019 = vmul.f32 %v961, %v1002
        %v1020 = vadd.f32 %v933, %v1004
        %v1021 = vadd.f32 %v934, %v1005
        %v1022 = vadd.f32 %v935, %v1006
        %v1023 = vadd.f32 %v936, %v1007
        %v1024 = vadd.f32 %v937, %v1008
        %v1025 = vadd.f32 %v938, %v1009
        %v1026 = vadd.f32 %v939, %v1010
        %v1027 = vadd.f32 %v940, %v1011
        %v1028 = vadd.f32 %v941, %v1012
        %v1029 = vadd.f32 %v942, %v1013
        %v1030 = vadd.f32 %v943, %v1014
        %v1031 = vadd.f32 %v944, %v1015
        %v1032 = vadd.f32 %v945, %v1016
        %v1033 = vadd.f32 %v946, %v1017
        %v1034 = vadd.f32 %v947, %v1018
        %v1035 = vadd.f32 %v948, %v1019
        %v1036 = vmul.f32 %v653, %v653
        %v1037 = vmul.f32 %v668, %v668
        %v1038 = vmul.f32 %v683, %v683
        %v1039 = vmul.f32 %v698, %v698
        %v1040 = vmul.f32 %v713, %v713
        %v1041 = vmul.f32 %v728, %v728
        %v1042 = vmul.f32 %v743, %v743
        %v1043 = vmul.f32 %v758, %v758
        %v1044 = vmul.f32 %v773, %v773
        %v1045 = vmul.f32 %v788, %v788
        %v1046 = vmul.f32 %v803, %v803
        %v1047 = vmul.f32 %v818, %v818
        %v1048 = vmul.f32 %v833, %v833
        %v1049 = vmul.f32 %v848, %v848
        %v1050 = vmul.f32 %v863, %v863
        %v1051 = vmul.f32 %v878, %v878
        %v1052 = vperm.slane %v424, 1
        %v1053 = vperm.slane %v425, 1
        %v1054 = vmul.f32 %v1052, %v1036
        %v1055 = vmul.f32 %v1053, %v1037
        %v1056 = vmul.f32 %v1052, %v1038
        %v1057 = vmul.f32 %v1053, %v1039
        %v1058 = vmul.f32 %v1052, %v1040
        %v1059 = vmul.f32 %v1053, %v1041
        %v1060 = vmul.f32 %v1052, %v1042
        %v1061 = vmul.f32 %v1053, %v1043
        %v1062 = vmul.f32 %v1052, %v1044
        %v1063 = vmul.f32 %v1053, %v1045
        %v1064 = vmul.f32 %v1052, %v1046
        %v1065 = vmul.f32 %v1053, %v1047
        %v1066 = vmul.f32 %v1052, %v1048
        %v1067 = vmul.f32 %v1053, %v1049
        %v1068 = vmul.f32 %v1052, %v1050
        %v1069 = vmul.f32 %v1053, %v1051
        %v1070 = vperm.slane %v424, 2
        %v1071 = vperm.slane %v425, 2
        %v1072 = vmul.f32 %v1070, %v653
        %v1073 = vmul.f32 %v1071, %v668
        %v1074 = vmul.f32 %v1070, %v683
        %v1075 = vmul.f32 %v1071, %v698
        %v1076 = vmul.f32 %v1070, %v713
        %v1077 = vmul.f32 %v1071, %v728
        %v1078 = vmul.f32 %v1070, %v743
        %v1079 = vmul.f32 %v1071, %v758
        %v1080 = vmul.f32 %v1070, %v773
        %v1081 = vmul.f32 %v1071, %v788
        %v1082 = vmul.f32 %v1070, %v803
        %v1083 = vmul.f32 %v1071, %v818
        %v1084 = vmul.f32 %v1070, %v833
        %v1085 = vmul.f32 %v1071, %v848
        %v1086 = vmul.f32 %v1070, %v863
        %v1087 = vmul.f32 %v1071, %v878
        %v1088 = vadd.f32 %v1054, %v1072
        %v1089 = vadd.f32 %v1055, %v1073
        %v1090 = vadd.f32 %v1056, %v1074
        %v1091 = vadd.f32 %v1057, %v1075
        %v1092 = vadd.f32 %v1058, %v1076
        %v1093 = vadd.f32 %v1059, %v1077
        %v1094 = vadd.f32 %v1060, %v1078
        %v1095 = vadd.f32 %v1061, %v1079
        %v1096 = vadd.f32 %v1062, %v1080
        %v1097 = vadd.f32 %v1063, %v1081
        %v1098 = vadd.f32 %v1064, %v1082
        %v1099 = vadd.f32 %v1065, %v1083
        %v1100 = vadd.f32 %v1066, %v1084
        %v1101 = vadd.f32 %v1067, %v1085
        %v1102 = vadd.f32 %v1068, %v1086
        %v1103 = vadd.f32 %v1069, %v1087
        %v1104 = vadd.f32 %v1088, %v1020
        %v1105 = vadd.f32 %v1089, %v1021
        %v1106 = vadd.f32 %v1090, %v1022
        %v1107 = vadd.f32 %v1091, %v1023
        %v1108 = vadd.f32 %v1092, %v1024
        %v1109 = vadd.f32 %v1093, %v1025
        %v1110 = vadd.f32 %v1094, %v1026
        %v1111 = vadd.f32 %v1095, %v1027
        %v1112 = vadd.f32 %v1096, %v1028
        %v1113 = vadd.f32 %v1097, %v1029
        %v1114 = vadd.f32 %v1098, %v1030
        %v1115 = vadd.f32 %v1099, %v1031
        %v1116 = vadd.f32 %v1100, %v1032
        %v1117 = vadd.f32 %v1101, %v1033
        %v1118 = vadd.f32 %v1102, %v1034
        %v1119 = vadd.f32 %v1103, %v1035
        %1120 = vst [vmem:[%s401] sm:$0xff] %v1104
        %1121 = vst [vmem:[%s401 + $0x8] sm:$0xff] %v1105
        %1122 = vst [vmem:[%s401 + $0x10] sm:$0xff] %v1106
        %1123 = vst [vmem:[%s401 + $0x18] sm:$0xff] %v1107
        %1124 = vst [vmem:[%s401 + $0x20] sm:$0xff] %v1108
        %1125 = vst [vmem:[%s401 + $0x28] sm:$0xff] %v1109
        %1126 = vst [vmem:[%s401 + $0x30] sm:$0xff] %v1110
        %1127 = vst [vmem:[%s401 + $0x38] sm:$0xff] %v1111
        %1128 = vst [vmem:[%s401 + $0x40] sm:$0xff] %v1112
        %1129 = vst [vmem:[%s401 + $0x48] sm:$0xff] %v1113
        %1130 = vst [vmem:[%s401 + $0x50] sm:$0xff] %v1114
        %1131 = vst [vmem:[%s401 + $0x58] sm:$0xff] %v1115
        %1132 = vst [vmem:[%s401 + $0x60] sm:$0xff] %v1116
        %1133 = vst [vmem:[%s401 + $0x68] sm:$0xff] %v1117
        %1134 = vst [vmem:[%s401 + $0x70] sm:$0xff] %v1118
        %1135 = vst [vmem:[%s401 + $0x78] sm:$0xff] %v1119
        %s1136 = sand.u32 %s190, 1
        %s1137 = scalar_lea.sflag [#allocation4], %s1136
        %s1138 = sand.u32 %s190, 1
        %s1139 = smul.addr %s1138, 128
        %s1140 = scalar_lea.vmem [#allocation8], %s1139
        %s1141 = sand.u32 %s216, 1
        %s1142 = scalar_lea.sflag [#allocation10], %s1141
        %s1143 = sand.u32 %s216, 1
        %s1144 = smul.addr %s1143, 128
        %s1145 = scalar_lea.vmem [#allocation9], %s1144
        // Predicated region
        $region57: #{tpu_custom_call.1} parent=43 // pred_check
          %p1146 = pneg %p200
        $region58: #{tpu_custom_call.1} parent=43 // pred_check_branch
          %1148 = sbr.rel (%p1146) target = $region60
        $region59: #{tpu_custom_call.1} parent=43 // pred_region
          %1150 = vsyncadd %s1137, 0
          %s1151 = smul.addr %s31, 16
          %s1152 = smul.addr %s1151, 8
          %s1153 = scalar_lea.hbm %s6, %s1152
          %s1154 = sshll.u32 %s1140, 4
          %s1155 = int_to_ptr.vmem [resolvable:$true] %s1154
          %s1156 = sshll.u32 %s1153, 4
          %s1157 = int_to_ptr.hbm [resolvable:$true] %s1156
          %1162 = dma.vmem_to_hbm [thread:$0]  %s1155, 2048, %s1157, %s1137, 256, 256, 16
        $region60: #{tpu_custom_call.1} parent=43 // pred_fallthru
          _
        // Predicated region
        $region61: #{tpu_custom_call.1} parent=43 // pred_check
          %p1163 = pneg %p226
        $region62: #{tpu_custom_call.1} parent=43 // pred_check_branch
          %1165 = sbr.rel (%p1163) target = $region64
        $region63: #{tpu_custom_call.1} parent=43 // pred_region
          %1167 = vsyncadd %s1142, 0
          %s1168 = smul.addr %s31, 16
          %s1169 = smul.addr %s1168, 8
          %s1170 = scalar_lea.hbm %s7, %s1169
          %s1171 = sshll.u32 %s1145, 4
          %s1172 = int_to_ptr.vmem [resolvable:$true] %s1171
          %s1173 = sshll.u32 %s1170, 4
          %s1174 = int_to_ptr.hbm [resolvable:$true] %s1173
          %1179 = dma.vmem_to_hbm [thread:$0]  %s1172, 2048, %s1174, %s1142, 256, 256, 16
        $region64: #{tpu_custom_call.1} parent=43 // pred_fallthru
          _
      $region44: #{tpu_custom_call.1} parent=5 // pred_fallthru
        _
      %p1180 = scmp.le.s32.totalorder 2, %s26
      // Predicated region
      $region65: #{tpu_custom_call.1} parent=5 // pred_check
        %p1181 = pneg %p1180
      $region66: #{tpu_custom_call.1} parent=5 // pred_check_branch
        %1183 = sbr.rel (%p1181) target = $region68
      $region67: #{tpu_custom_call.1} parent=5 // pred_region
        %s1184 = ssub.s32 %s26, 2
        // Predicated region
        $region69: #{tpu_custom_call.1} parent=67 // pred_check
          %p1185 = pneg %p206
        $region70: #{tpu_custom_call.1} parent=67 // pred_check_branch
          %1187 = sbr.rel (%p1185) target = $region72
        $region71: #{tpu_custom_call.1} parent=67 // pred_region
          %s1188 = sand.u32 %s191, 1
          %s1189 = scalar_lea.sflag [#allocation4], %s1188
          %s1190 = sand.u32 %s191, 1
          %s1191 = smul.addr %s1190, 128
          %s1192 = scalar_lea.vmem [#allocation8], %s1191
          %1194 = dma.done %s1189, 2048
        $region72: #{tpu_custom_call.1} parent=67 // pred_fallthru
          _
        // Predicated region
        $region73: #{tpu_custom_call.1} parent=67 // pred_check
          %p1195 = pneg %p232
        $region74: #{tpu_custom_call.1} parent=67 // pred_check_branch
          %1197 = sbr.rel (%p1195) target = $region76
        $region75: #{tpu_custom_call.1} parent=67 // pred_region
          %s1198 = sand.u32 %s217, 1
          %s1199 = scalar_lea.sflag [#allocation10], %s1198
          %s1200 = sand.u32 %s217, 1
          %s1201 = smul.addr %s1200, 128
          %s1202 = scalar_lea.vmem [#allocation9], %s1201
          %1204 = dma.done %s1199, 2048
        $region76: #{tpu_custom_call.1} parent=67 // pred_fallthru
          _
      $region68: #{tpu_custom_call.1} parent=5 // pred_fallthru
        _
    $region6: #{tpu_custom_call.1} parent=1 // loop_footer
      %s30 = sadd.s32 1, %s26
    $region7: #{tpu_custom_call.1} parent=1 // loop_footer_branch
      %25 = sbr.rel target = $region3
    $region8: #{tpu_custom_call.1} parent=1 // loop_exit
      _
    %1205 = vsyncpa [#allocation3], 1
    %s1206 = scalar_lea.sflag [#allocation3], 1
    %1207 = vsyncpa %s1206, 1
    %1208 = vsyncpa [#allocation6], 1
    %s1209 = scalar_lea.sflag [#allocation6], 1
    %1210 = vsyncpa %s1209, 1
    %1211 = vsyncpa [#allocation4], 1
    %s1212 = scalar_lea.sflag [#allocation4], 1
    %1213 = vsyncpa %s1212, 1
    %1214 = vsyncpa [#allocation10], 1
    %s1215 = scalar_lea.sflag [#allocation10], 1
    %1216 = vsyncpa %s1215, 1

</llo_original>
